<compile_context>
chip_gen: v5e
topology: v5e:2x2
jax: 0.10.0
libtpu: 0.0.40
codegen_flags: <defaults>
</compile_context>

<pallas_src>
import jax
import jax.numpy as jnp
from jax.experimental import pallas as pl
from jax.experimental.pallas import tpu as pltpu


def _round_up(x, m):
    return (x + m - 1) // m * m


# ---------------------------------------------------------------------------
# Pallas kernel: fused (k=1 conv -> ReLU -> k=1 conv) for ALL heads at once,
# channel-major.
#   x_ref  : (1, C_in, TL)     f32  (cast to compute dtype in-kernel)
#   w1t_ref: (H_tot, C_in)     compute dtype (per-head hidden convs, concat, T)
#   b1_ref : (H_tot, 1)        f32
#   w2t_ref: (C_rows, H_tot)   compute dtype (per-head final convs, block-diag, T)
#   b2_ref : (C_rows, 1)       f32
#   o_ref  : (1, C_rows, TL)   f32  (classes on sublanes, positions on lanes)
# ---------------------------------------------------------------------------
def _sep_head_kernel(x_ref, w1t_ref, b1_ref, w2t_ref, b2_ref, o_ref):
    x = x_ref[0].astype(w1t_ref.dtype)                                   # (C_in, TL)
    h = jnp.dot(w1t_ref[...], x, preferred_element_type=jnp.float32)     # (H_tot, TL)
    h = jnp.maximum(h + b1_ref[...], 0.0)                                # bias + ReLU (f32, VPU)
    h = h.astype(w2t_ref.dtype)                                          # back to MXU input dtype
    o = jnp.dot(w2t_ref[...], h, preferred_element_type=jnp.float32)     # (C_rows, TL)
    o_ref[0] = (o + b2_ref[...]).astype(o_ref.dtype)


def _run_fused_heads(y, w1t, b1, w2t, b2, *, tl_max=2048):
    """y: (N, C_in, L) f32.  Returns (N, C_rows, L_pad) f32 (all heads stacked on axis 1)."""
    N, c_in, L = y.shape
    h_tot = w1t.shape[0]
    c_rows = w2t.shape[0]

    if L <= tl_max:
        tl, l_pad = L, L
        # v7x megacore: keep >= 2 grid steps when the batch axis alone can't.
        if N == 1 and L >= 256 and L % 256 == 0:
            tl = L // 2
    else:
        tl = (tl_max // 128) * 128
        l_pad = _round_up(L, tl)
    if l_pad != L:
        y = jnp.pad(y, ((0, 0), (0, 0), (0, l_pad - L)))
    grid = (N, l_pad // tl)

    bytes_accessed = int(
        N * c_in * l_pad * 4                                   # X stream (f32, read once)
        + w1t.size * w1t.dtype.itemsize + w2t.size * w2t.dtype.itemsize
        + (b1.size + b2.size) * 4
        + N * c_rows * l_pad * 4)                              # output stream (sublane-compact)
    cost = pl.CostEstimate(
        flops=2 * N * l_pad * (c_in * h_tot + h_tot * c_rows),
        transcendentals=0,
        bytes_accessed=bytes_accessed)

    out = pl.pallas_call(
        _sep_head_kernel,
        out_shape=jax.ShapeDtypeStruct((N, c_rows, l_pad), jnp.float32),
        grid=grid,
        in_specs=[
            pl.BlockSpec((1, c_in, tl), lambda n, l: (n, 0, l)),   # X: NCL-native, pipelined
            pl.BlockSpec((h_tot, c_in), lambda n, l: (0, 0)),      # weights: VMEM-resident
            pl.BlockSpec((h_tot, 1), lambda n, l: (0, 0)),
            pl.BlockSpec((c_rows, h_tot), lambda n, l: (0, 0)),
            pl.BlockSpec((c_rows, 1), lambda n, l: (0, 0)),
        ],
        out_specs=pl.BlockSpec((1, c_rows, tl), lambda n, l: (n, 0, l)),
        compiler_params=pltpu.CompilerParams(
            dimension_semantics=("parallel", "parallel")),         # split across TCs on v7x
        cost_estimate=cost,
    )(y, w1t, b1, w2t, b2)
    return out


# ---------------------------------------------------------------------------
# SepHead module (parameters built deterministically in-script)
# ---------------------------------------------------------------------------
class SepHeadPallas:
    def __init__(self, in_channels, heads, head_conv=64, final_kernel=1,
                 bn=False, init_bias=-2.19, *, key,
                 compute_dtype=jnp.bfloat16, tl_max=2048):
        assert final_kernel == 1, "kernel implements the k=1 (pointwise) case"
        assert not bn, "bn=False path implemented"
        # TODO(synk): bn=True (BN1d between convs) is not implemented.
        self.heads = dict(heads)
        self.head_list = list(self.heads.keys())
        self.class_counts = [self.heads[h][0] for h in self.head_list]
        self.head_conv = head_conv
        self.compute_dtype = jnp.dtype(compute_dtype)
        self.tl_max = tl_max

        # ---- per-head parameters (same init scheme as the PyTorch module) ----
        self.params = {}
        for head, (classes, num_conv) in self.heads.items():
            assert num_conv == 2, "standard SepHead config: hidden conv + final conv"
            key, k1, k2, k3 = jax.random.split(key, 4)
            # hidden Conv1d(in_channels -> head_conv, k=1): PyTorch default init
            bound1 = 1.0 / jnp.sqrt(in_channels)
            w1 = jax.random.uniform(k1, (in_channels, head_conv), jnp.float32,
                                    -bound1, bound1)
            b1 = jax.random.uniform(k2, (head_conv,), jnp.float32, -bound1, bound1)
            # final Conv1d(head_conv -> classes, k=1)
            if 'hm' in head:
                bound2 = 1.0 / jnp.sqrt(head_conv)
                w2 = jax.random.uniform(k3, (head_conv, classes), jnp.float32,
                                        -bound2, bound2)
                b2 = jnp.full((classes,), init_bias, jnp.float32)
            else:
                # kaiming_init (mode='fan_out', relu): N(0, sqrt(2/fan_out)), bias=0
                std = jnp.sqrt(2.0 / classes)
                w2 = std * jax.random.normal(k3, (head_conv, classes), jnp.float32)
                b2 = jnp.zeros((classes,), jnp.float32)
            self.params[head] = (w1, b1, w2, b2)

        # ---- fused parameters (built once): concat hidden convs (transposed),
        #      block-diag final convs (transposed), classes padded to a
        #      sublane multiple (8) so the output block is layout-clean. ----
        h_tot = head_conv * len(self.head_list)
        total_classes = sum(self.class_counts)
        c_rows = _round_up(total_classes, 8)
        self.total_classes = total_classes
        self.c_rows = c_rows
        # Note (v6e/v7x): H_tot=384 maps to one full + one half-empty 256-deep
        # MXU K-pass; prefer a multiple of 256 if head_conv/head count is tuned.

        w1t_all = jnp.concatenate([self.params[h][0].T for h in self.head_list],
                                  axis=0)                               # (H_tot, C_in)
        b1_all = jnp.concatenate([self.params[h][1] for h in self.head_list],
                                 axis=0)                                # (H_tot,)
        w2t_all = jnp.zeros((c_rows, h_tot), jnp.float32)
        b2_all = jnp.zeros((c_rows,), jnp.float32)
        col = 0
        for idx, h in enumerate(self.head_list):
            _, _, w2_h, b2_h = self.params[h]
            ncls = self.class_counts[idx]
            w2t_all = w2t_all.at[col:col + ncls,
                                 idx * head_conv:(idx + 1) * head_conv].set(w2_h.T)
            b2_all = b2_all.at[col:col + ncls].set(b2_h)
            col += ncls
        self.fused = (w1t_all.astype(self.compute_dtype),
                      b1_all.reshape(h_tot, 1),
                      w2t_all.astype(self.compute_dtype),
                      b2_all.reshape(c_rows, 1))

    def __call__(self, x, y):
        """x: dict to populate.  y: (N, C_in, L) float32 (NCL, like PyTorch)."""
        N, C, L = y.shape
        w1t, b1, w2t, b2 = self.fused
        o = _run_fused_heads(y.astype(jnp.float32), w1t, b1, w2t, b2,
                             tl_max=self.tl_max)                        # (N, C_rows, L_pad)
        col = 0
        for idx, head in enumerate(self.head_list):
            ncls = self.class_counts[idx]
            x[head] = o[:, col:col + ncls, :L]                          # (N, ncls, L), already NCL
            col += ncls
        return x


# ---------------------------------------------------------------------------
# References
# ---------------------------------------------------------------------------
def _reference_f32(params, heads, y):
    """Pure-JAX f32 reference of the PyTorch forward (conv1d k=1 == einsum)."""
    out = {}
    for head in heads:
        w1, b1, w2, b2 = params[head]
        h = jnp.einsum('ncl,ch->nhl', y, w1) + b1[None, :, None]
        h = jnp.maximum(h, 0.0)
        out[head] = jnp.einsum('nhl,ho->nol', h, w2) + b2[None, :, None]
    return out


def _reference_fused(model, y):
    """Pure-JAX reference that mirrors the kernel's fused math & dtype casts."""
    w1t, b1, w2t, b2 = model.fused
    x = y.astype(model.compute_dtype)                                   # (N, C, L)
    h = jnp.einsum('hc,ncl->nhl', w1t, x,
                   preferred_element_type=jnp.float32) + b1[None, :, :]
    h = jnp.maximum(h, 0.0).astype(w2t.dtype)
    o = jnp.einsum('oh,nhl->nol', w2t, h,
                   preferred_element_type=jnp.float32) + b2[None, :, :]
    out = {}
    col = 0
    for idx, head in enumerate(model.head_list):
        ncls = model.class_counts[idx]
        out[head] = o[:, col:col + ncls, :]
        col += ncls
    return out


# ---------------------------------------------------------------------------
if __name__ == "__main__":
    key = jax.random.PRNGKey(0)
    key, k_in, k_param = jax.random.split(key, 3)

    # Small shapes consistent with the module: batch=2, in_channels=4, L=16.
    N, C_IN, L = 2, 4, 16
    HEAD_CONV = 64
    heads = {'hm': (2, 2), 'reg': (2, 2), 'height': (1, 2),
             'dim': (3, 2), 'rot': (2, 2), 'iou': (1, 2)}

    y = jax.random.normal(k_in, (N, C_IN, L), jnp.float32)     # NCL layout

    # (1) f32 compute path: exact parity with the PyTorch per-head math.
    model_f32 = SepHeadPallas(C_IN, heads, head_conv=HEAD_CONV, final_kernel=1,
                              bn=False, key=k_param, compute_dtype=jnp.float32)
    out_f32 = model_f32({}, y)
    out_f32 = jax.tree_util.tree_map(jax.block_until_ready, out_f32)
    ref_f32 = _reference_f32(model_f32.params, heads, y)
    for head, (classes, _) in heads.items():
        assert out_f32[head].shape == (N, classes, L), (head, out_f32[head].shape)
        assert jnp.allclose(out_f32[head], ref_f32[head], atol=1e-4, rtol=1e-4), head

    # (2) bf16 MXU-input path (default perf config for v5e/v6e/v7x): compare
    #     against a pure-JAX reference that mirrors the same dtype casts.
    model_bf16 = SepHeadPallas(C_IN, heads, head_conv=HEAD_CONV, final_kernel=1,
                               bn=False, key=k_param, compute_dtype=jnp.bfloat16)
    out_bf16 = model_bf16({}, y)
    out_bf16 = jax.tree_util.tree_map(jax.block_until_ready, out_bf16)
    ref_bf16 = _reference_fused(model_bf16, y)
    for head, (classes, _) in heads.items():
        assert out_bf16[head].shape == (N, classes, L), (head, out_bf16[head].shape)
        assert jnp.allclose(out_bf16[head], ref_bf16[head], atol=1e-3, rtol=1e-3), head

    print("KERNEL_OK")
</pallas_src>

<mosaic_0001>
module attributes {stable_mosaic.version = 11 : i64} {
  func.func @_sep_head_kernel(%arg0: i32, %arg1: i32, %arg2: memref<1x4x16xf32, #tpu.memory_space<vmem>>, %arg3: memref<384x4xf32, #tpu.memory_space<vmem>>, %arg4: memref<384x1xf32, #tpu.memory_space<vmem>>, %arg5: memref<16x384xf32, #tpu.memory_space<vmem>>, %arg6: memref<16x1xf32, #tpu.memory_space<vmem>>, %arg7: memref<1x16x16xf32, #tpu.memory_space<vmem>>) attributes {dimension_semantics = [#tpu.dimension_semantics<parallel>, #tpu.dimension_semantics<parallel>], iteration_bounds = array<i64: 2, 1>, scalar_prefetch = 0 : i64, scratch_operands = 0 : i64, tpu.core_type = #tpu.core_type<tc>, window_params = [{transform_indices = @transform_0, window_bounds = array<i64: 1, 4, 16>}, {pipeline_mode = #tpu.pipeline_mode<synchronous>, transform_indices = @transform_1, window_bounds = array<i64: 384, 4>}, {pipeline_mode = #tpu.pipeline_mode<synchronous>, transform_indices = @transform_2, window_bounds = array<i64: 384, 1>}, {pipeline_mode = #tpu.pipeline_mode<synchronous>, transform_indices = @transform_3, window_bounds = array<i64: 16, 384>}, {pipeline_mode = #tpu.pipeline_mode<synchronous>, transform_indices = @transform_4, window_bounds = array<i64: 16, 1>}, {transform_indices = @transform_5, window_bounds = array<i64: 1, 16, 16>}]} {
    %c0 = arith.constant 0 : index
    %c0_0 = arith.constant 0 : index
    %c0_1 = arith.constant 0 : index
    %0 = vector.load %arg2[%c0, %c0_0, %c0_1] : memref<1x4x16xf32, #tpu.memory_space<vmem>>, vector<1x4x16xf32>
    %1 = vector.shape_cast %0 : vector<1x4x16xf32> to vector<4x16xf32>
    %c0_2 = arith.constant 0 : index
    %c0_3 = arith.constant 0 : index
    %2 = vector.load %arg3[%c0_2, %c0_3] : memref<384x4xf32, #tpu.memory_space<vmem>>, vector<384x4xf32>
    %cst = arith.constant dense<0.000000e+00> : vector<384x16xf32>
    %3 = tpu.matmul %2, %1, %cst {dimension_numbers = #tpu.dot_dimension_numbers<[1], [0], [0], [1], [0, 0, 1, 1], [], []>} : vector<384x4xf32>, vector<4x16xf32>, vector<384x16xf32> -> vector<384x16xf32>
    %c0_4 = arith.constant 0 : index
    %c0_5 = arith.constant 0 : index
    %4 = vector.load %arg4[%c0_4, %c0_5] : memref<384x1xf32, #tpu.memory_space<vmem>>, vector<384x1xf32>
    %5 = vector.broadcast %4 : vector<384x1xf32> to vector<384x16xf32>
    %6 = arith.addf %3, %5 : vector<384x16xf32>
    %cst_6 = arith.constant 0.000000e+00 : f32
    %7 = vector.broadcast %cst_6 : f32 to vector<384x16xf32>
    %8 = arith.maximumf %6, %7 : vector<384x16xf32>
    %c0_7 = arith.constant 0 : index
    %c0_8 = arith.constant 0 : index
    %9 = vector.load %arg5[%c0_7, %c0_8] : memref<16x384xf32, #tpu.memory_space<vmem>>, vector<16x384xf32>
    %cst_9 = arith.constant dense<0.000000e+00> : vector<16x16xf32>
    %10 = tpu.matmul %9, %8, %cst_9 {dimension_numbers = #tpu.dot_dimension_numbers<[1], [0], [0], [1], [0, 0, 1, 1], [], []>} : vector<16x384xf32>, vector<384x16xf32>, vector<16x16xf32> -> vector<16x16xf32>
    %c0_10 = arith.constant 0 : index
    %c0_11 = arith.constant 0 : index
    %11 = vector.load %arg6[%c0_10, %c0_11] : memref<16x1xf32, #tpu.memory_space<vmem>>, vector<16x1xf32>
    %12 = vector.broadcast %11 : vector<16x1xf32> to vector<16x16xf32>
    %13 = arith.addf %10, %12 : vector<16x16xf32>
    %c0_12 = arith.constant 0 : index
    %c0_13 = arith.constant 0 : index
    %c0_14 = arith.constant 0 : index
    %14 = vector.load %arg7[%c0_12, %c0_13, %c0_14] : memref<1x16x16xf32, #tpu.memory_space<vmem>>, vector<1x16x16xf32>
    %15 = vector.shape_cast %14 : vector<1x16x16xf32> to vector<16x16xf32>
    %16 = vector.shape_cast %13 : vector<16x16xf32> to vector<1x16x16xf32>
    tpu.vector_store %arg7[%c0_12, %c0_13, %c0_14], %16 {strides = array<i32>} : memref<1x16x16xf32, #tpu.memory_space<vmem>>, vector<1x16x16xf32>,
    return
  }
  func.func @transform_0(%arg0: i32, %arg1: i32) -> (i32, i32, i32) {
    %c0_i32 = arith.constant 0 : i32
    %c0_i32_0 = arith.constant 0 : i32
    return %arg0, %c0_i32, %arg1 : i32, i32, i32
  }
  func.func @transform_1(%arg0: i32, %arg1: i32) -> (i32, i32) {
    %c0_i32 = arith.constant 0 : i32
    %c0_i32_0 = arith.constant 0 : i32
    %c0_i32_1 = arith.constant 0 : i32
    return %c0_i32, %c0_i32_0 : i32, i32
  }
  func.func @transform_2(%arg0: i32, %arg1: i32) -> (i32, i32) {
    %c0_i32 = arith.constant 0 : i32
    %c0_i32_0 = arith.constant 0 : i32
    %c0_i32_1 = arith.constant 0 : i32
    return %c0_i32, %c0_i32_0 : i32, i32
  }
  func.func @transform_3(%arg0: i32, %arg1: i32) -> (i32, i32) {
    %c0_i32 = arith.constant 0 : i32
    %c0_i32_0 = arith.constant 0 : i32
    %c0_i32_1 = arith.constant 0 : i32
    return %c0_i32, %c0_i32_0 : i32, i32
  }
  func.func @transform_4(%arg0: i32, %arg1: i32) -> (i32, i32) {
    %c0_i32 = arith.constant 0 : i32
    %c0_i32_0 = arith.constant 0 : i32
    %c0_i32_1 = arith.constant 0 : i32
    return %c0_i32, %c0_i32_0 : i32, i32
  }
  func.func @transform_5(%arg0: i32, %arg1: i32) -> (i32, i32, i32) {
    %c0_i32 = arith.constant 0 : i32
    %c0_i32_0 = arith.constant 0 : i32
    return %arg0, %c0_i32, %arg1 : i32, i32, i32
  }
}

</mosaic_0001>

<llo_original>
// kernel: tpu_custom_call.1
$region0: #{tpu_custom_call.1}
  #allocation0 [shape = 'u32[]', space=smem, size = 0x4, offset = 0x4, fixed_abs, tag = 'smem constant byte address 0x4 - core index']
  #allocation1 [shape = 'u32[72,128]{1,0:T(1,128)}', space=vmem, size = 0x9000, scoped, tag = 'internal scratch']
  %s0 = inlined_call_operand.vmem [shape: f32[2,4,16], index: 0, kind: input, shape index: {}]
  %s1 = inlined_call_operand.vmem [shape: f32[384,4], index: 1, kind: input, shape index: {}]
  %s2 = inlined_call_operand.vmem [shape: f32[384,1], index: 2, kind: input, shape index: {}]
  %s3 = inlined_call_operand.vmem [shape: f32[16,384], index: 3, kind: input, shape index: {}]
  %s4 = inlined_call_operand.vmem [shape: f32[16,1], index: 4, kind: input, shape index: {}]
  %s5 = inlined_call_operand.hbm [shape: f32[2,16,16], index: 5, kind: output, shape index: {}]
  %s6 = sld [smem:[#allocation0]]
  $region53: #{tpu_custom_call.1} parent=0
    _
  %s8 = ssub.s32 1, %s6
  %s9 = scalar_select 0, %s8, %s6
  $region1: #{tpu_custom_call.1} parent=0
    #allocation2 [shape = 'u8[16384]{0}', space=vmem, size = 0x4000, scoped, tag = 'output window, operand 0']
    #allocation3 [shape = 's32[2]{0}', space=sflag, size = 0x8, scoped, tag = 'scoped memory for tpu_custom_call.1']
    %10 = vsyncpa [#allocation3], 0
    %s11 = scalar_lea.sflag [#allocation3], 1
    %12 = vsyncpa %s11, 0
    loop: start=0, step=1, limit=4
    $region2: #{tpu_custom_call.1} parent=1 // loop_pre_header
      _
    $region3: #{tpu_custom_call.1} parent=1 // loop_header
      %s14 = sphi 0, %s18
      %p15 = scmp.ge.s32.totalorder %s14, 4
      %s21 = sphi 0, %s33
      %s22 = sphi 0, %s29
      %s23 = sphi 0, %s21
      %s24 = sphi 0, %s22
      %s25 = sphi 0, %s23
      %s26 = sphi 0, %s24
      %s38 = sphi 0, %s40
      %s41 = sphi 0, %s38
      %s42 = sphi 0, %s41
      %s58 = sphi 0, %s42
      %s62 = sphi 0, %s62
      %s64 = sphi 0, %s62
      %s65 = sphi 0, %s64
      %s79 = sphi 0, %s65
      %s83 = sphi 0, %s83
      %s85 = sphi 0, %s83
      %s86 = sphi 0, %s85
      %s100 = sphi 0, %s86
      %s104 = sphi 0, %s104
      %s106 = sphi 0, %s104
      %s107 = sphi 0, %s106
      %s121 = sphi 0, %s107
      %s125 = sphi 0, %s125
      %s127 = sphi 0, %s125
      %s128 = sphi 0, %s127
      %s142 = sphi 0, %s128
      %s150 = sphi 0, %s152
      %s153 = sphi 0, %s150
      %s154 = sphi 0, %s153
      %s170 = sphi 0, %s154
    $region4: #{tpu_custom_call.1} parent=1 // loop_header_branch
      %17 = sbr.rel (%p15) target = $region8
    $region5: #{tpu_custom_call.1} parent=1 // loop_body
      %s19 = ssub.s32 %s14, 1
      %s20 = ssub.s32 %s14, 2
      %s27 = sadd.s32 1, %s22
      %p28 = scmp.ge.s32.totalorder %s27, 1
      %s29 = scalar_select %p28, 0, %s27
      %s30 = sadd.s32 1, %s21
      %s31 = scalar_select %p28, %s30, %s21
      %p32 = scmp.ge.s32.totalorder %s31, 2
      %s33 = scalar_select %p32, 0, %s31
      %s34 = ssub.s32 %s21, %s33
      %s35 = ssub.s32 %s22, %s29
      %s36 = sor.u32 %s34, %s35
      %p37 = scmp.eq.s32.totalorder %s36, 0
      %s39 = sadd.s32 %s38, 1
      %s40 = scalar_select %p37, %s38, %s39
      %p43 = pneg %p37
      %p44 = scmp.eq.s32.totalorder %s14, 1
      %p45 = por %p43, %p44
      %p46 = scmp.ne.s32.totalorder %s38, %s41
      %p47 = scmp.eq.s32.totalorder %s14, 0
      %p48 = por %p46, %p47
      %p49 = scmp.ne.s32.totalorder %s38, %s41
      %p50 = scmp.eq.s32.totalorder %s19, 1
      %p51 = por %p49, %p50
      %p52 = scmp.ne.s32.totalorder %s41, %s42
      %p53 = scmp.eq.s32.totalorder %s19, 0
      %p54 = por %p52, %p53
      %p55 = scmp.ne.s32.totalorder %s41, %s42
      %p56 = scmp.eq.s32.totalorder %s20, 1
      %p57 = por %p55, %p56
      %p59 = scmp.ne.s32.totalorder %s42, %s58
      %p60 = scmp.eq.s32.totalorder %s20, 0
      %p61 = por %p59, %p60
      %s63 = sadd.s32 %s62, 1
      %p66 = scmp.eq.s32.totalorder %s14, 1
      %p67 = scmp.ne.s32.totalorder %s62, %s64
      %p68 = scmp.eq.s32.totalorder %s14, 0
      %p69 = por %p67, %p68
      %p70 = scmp.ne.s32.totalorder %s62, %s64
      %p71 = scmp.eq.s32.totalorder %s19, 1
      %p72 = por %p70, %p71
      %p73 = scmp.ne.s32.totalorder %s64, %s65
      %p74 = scmp.eq.s32.totalorder %s19, 0
      %p75 = por %p73, %p74
      %p76 = scmp.ne.s32.totalorder %s64, %s65
      %p77 = scmp.eq.s32.totalorder %s20, 1
      %p78 = por %p76, %p77
      %p80 = scmp.ne.s32.totalorder %s65, %s79
      %p81 = scmp.eq.s32.totalorder %s20, 0
      %p82 = por %p80, %p81
      %s84 = sadd.s32 %s83, 1
      %p87 = scmp.eq.s32.totalorder %s14, 1
      %p88 = scmp.ne.s32.totalorder %s83, %s85
      %p89 = scmp.eq.s32.totalorder %s14, 0
      %p90 = por %p88, %p89
      %p91 = scmp.ne.s32.totalorder %s83, %s85
      %p92 = scmp.eq.s32.totalorder %s19, 1
      %p93 = por %p91, %p92
      %p94 = scmp.ne.s32.totalorder %s85, %s86
      %p95 = scmp.eq.s32.totalorder %s19, 0
      %p96 = por %p94, %p95
      %p97 = scmp.ne.s32.totalorder %s85, %s86
      %p98 = scmp.eq.s32.totalorder %s20, 1
      %p99 = por %p97, %p98
      %p101 = scmp.ne.s32.totalorder %s86, %s100
      %p102 = scmp.eq.s32.totalorder %s20, 0
      %p103 = por %p101, %p102
      %s105 = sadd.s32 %s104, 1
      %p108 = scmp.eq.s32.totalorder %s14, 1
      %p109 = scmp.ne.s32.totalorder %s104, %s106
      %p110 = scmp.eq.s32.totalorder %s14, 0
      %p111 = por %p109, %p110
      %p112 = scmp.ne.s32.totalorder %s104, %s106
      %p113 = scmp.eq.s32.totalorder %s19, 1
      %p114 = por %p112, %p113
      %p115 = scmp.ne.s32.totalorder %s106, %s107
      %p116 = scmp.eq.s32.totalorder %s19, 0
      %p117 = por %p115, %p116
      %p118 = scmp.ne.s32.totalorder %s106, %s107
      %p119 = scmp.eq.s32.totalorder %s20, 1
      %p120 = por %p118, %p119
      %p122 = scmp.ne.s32.totalorder %s107, %s121
      %p123 = scmp.eq.s32.totalorder %s20, 0
      %p124 = por %p122, %p123
      %s126 = sadd.s32 %s125, 1
      %p129 = scmp.eq.s32.totalorder %s14, 1
      %p130 = scmp.ne.s32.totalorder %s125, %s127
      %p131 = scmp.eq.s32.totalorder %s14, 0
      %p132 = por %p130, %p131
      %p133 = scmp.ne.s32.totalorder %s125, %s127
      %p134 = scmp.eq.s32.totalorder %s19, 1
      %p135 = por %p133, %p134
      %p136 = scmp.ne.s32.totalorder %s127, %s128
      %p137 = scmp.eq.s32.totalorder %s19, 0
      %p138 = por %p136, %p137
      %p139 = scmp.ne.s32.totalorder %s127, %s128
      %p140 = scmp.eq.s32.totalorder %s20, 1
      %p141 = por %p139, %p140
      %p143 = scmp.ne.s32.totalorder %s128, %s142
      %p144 = scmp.eq.s32.totalorder %s20, 0
      %p145 = por %p143, %p144
      %s146 = ssub.s32 %s21, %s33
      %s147 = ssub.s32 %s22, %s29
      %s148 = sor.u32 %s146, %s147
      %p149 = scmp.eq.s32.totalorder %s148, 0
      %s151 = sadd.s32 %s150, 1
      %s152 = scalar_select %p149, %s150, %s151
      %p155 = pneg %p149
      %p156 = scmp.eq.s32.totalorder %s14, 1
      %p157 = por %p155, %p156
      %p158 = scmp.ne.s32.totalorder %s150, %s153
      %p159 = scmp.eq.s32.totalorder %s14, 0
      %p160 = por %p158, %p159
      %p161 = scmp.ne.s32.totalorder %s150, %s153
      %p162 = scmp.eq.s32.totalorder %s19, 1
      %p163 = por %p161, %p162
      %p164 = scmp.ne.s32.totalorder %s153, %s154
      %p165 = scmp.eq.s32.totalorder %s19, 0
      %p166 = por %p164, %p165
      %p167 = scmp.ne.s32.totalorder %s153, %s154
      %p168 = scmp.eq.s32.totalorder %s20, 1
      %p169 = por %p167, %p168
      %p171 = scmp.ne.s32.totalorder %s154, %s170
      %p172 = scmp.eq.s32.totalorder %s20, 0
      %p173 = por %p171, %p172
      %p174 = scmp.le.s32.totalorder 1, %s14
      %p175 = scmp.lt.s32.totalorder %s14, 3
      %p176 = pnand %p174, %p175
      %p177 = pneg %p176
      // Predicated region
      $region9: #{tpu_custom_call.1} parent=5 // pred_check
        _
      $region10: #{tpu_custom_call.1} parent=5 // pred_check_branch
        %179 = sbr.rel (%p176) target = $region12
      $region11: #{tpu_custom_call.1} parent=5 // pred_region
        %s180 = ssub.s32 %s14, 1
        // Predicated region
        $region13: #{tpu_custom_call.1} parent=11 // pred_check
          %p181 = pneg %p75
        $region14: #{tpu_custom_call.1} parent=11 // pred_check_branch
          %183 = sbr.rel (%p181) target = $region16
        $region15: #{tpu_custom_call.1} parent=11 // pred_region
          _
        $region16: #{tpu_custom_call.1} parent=11 // pred_fallthru
          _
        // Predicated region
        $region17: #{tpu_custom_call.1} parent=11 // pred_check
          %p184 = pneg %p96
        $region18: #{tpu_custom_call.1} parent=11 // pred_check_branch
          %186 = sbr.rel (%p184) target = $region20
        $region19: #{tpu_custom_call.1} parent=11 // pred_region
          _
        $region20: #{tpu_custom_call.1} parent=11 // pred_fallthru
          _
        // Predicated region
        $region21: #{tpu_custom_call.1} parent=11 // pred_check
          %p187 = pneg %p117
        $region22: #{tpu_custom_call.1} parent=11 // pred_check_branch
          %189 = sbr.rel (%p187) target = $region24
        $region23: #{tpu_custom_call.1} parent=11 // pred_region
          _
        $region24: #{tpu_custom_call.1} parent=11 // pred_fallthru
          _
        // Predicated region
        $region25: #{tpu_custom_call.1} parent=11 // pred_check
          %p190 = pneg %p138
        $region26: #{tpu_custom_call.1} parent=11 // pred_check_branch
          %192 = sbr.rel (%p190) target = $region28
        $region27: #{tpu_custom_call.1} parent=11 // pred_region
          _
        $region28: #{tpu_custom_call.1} parent=11 // pred_fallthru
          _
      $region12: #{tpu_custom_call.1} parent=5 // pred_fallthru
        _
      %p193 = scmp.lt.s32.totalorder %s14, 2
      // Predicated region
      $region29: #{tpu_custom_call.1} parent=5 // pred_check
        %p194 = pneg %p193
      $region30: #{tpu_custom_call.1} parent=5 // pred_check_branch
        %196 = sbr.rel (%p194) target = $region32
      $region31: #{tpu_custom_call.1} parent=5 // pred_region
        // Predicated region
        $region33: #{tpu_custom_call.1} parent=31 // pred_check
          %p197 = pneg %p48
        $region34: #{tpu_custom_call.1} parent=31 // pred_check_branch
          %199 = sbr.rel (%p197) target = $region36
        $region35: #{tpu_custom_call.1} parent=31 // pred_region
          %p200 = scmp.lt.s32.totalorder %s21, 1
          %s201 = scalar_select %p200, %s21, 1
          %p202 = scmp.lt.s32.totalorder %s22, 0
          %s203 = scalar_select %p202, %s22, 0
          %s204 = sadd.s32 %s203, %s201
          %s205 = smul.addr %s204, 4
          %s206 = scalar_lea.vmem %s0, %s205
        $region36: #{tpu_custom_call.1} parent=31 // pred_fallthru
          _
      $region32: #{tpu_custom_call.1} parent=5 // pred_fallthru
        _
      %p207 = scmp.le.s32.totalorder 1, %s14
      %p208 = scmp.lt.s32.totalorder %s14, 3
      %p209 = pnand %p207, %p208
      %p210 = pneg %p209
      // Predicated region
      $region37: #{tpu_custom_call.1} parent=5 // pred_check
        _
      $region38: #{tpu_custom_call.1} parent=5 // pred_check_branch
        %212 = sbr.rel (%p209) target = $region40
      $region39: #{tpu_custom_call.1} parent=5 // pred_region
        %s213 = ssub.s32 %s14, 1
        %p214 = scmp.lt.s32.totalorder %s23, 1
        %s215 = scalar_select %p214, %s23, 1
        %p216 = scmp.lt.s32.totalorder %s24, 0
        %s217 = scalar_select %p216, %s24, 0
        %s218 = sadd.s32 %s217, %s215
        %s219 = smul.addr %s218, 4
        %s220 = scalar_lea.vmem %s0, %s219
        %p221 = pneg %p54
        %p222 = pneg %p51
        %p223 = pneg %p75
        %p224 = pneg %p72
        %p225 = pneg %p96
        %p226 = pneg %p93
        %p227 = pneg %p117
        %p228 = pneg %p114
        %p229 = pneg %p138
        %p230 = pneg %p135
        %p231 = pneg %p166
        %p232 = pneg %p163
        %s233 = sand.u32 %s153, 1
        %s234 = scalar_lea.sflag [#allocation3], %s233
        %s235 = sand.u32 %s153, 1
        %s236 = smul.addr %s235, 16
        %s237 = scalar_lea.vmem [#allocation2], %s236
        %p238 = scmp.lt.s32.totalorder %s23, 1
        %s239 = scalar_select %p238, %s23, 1
        %p240 = scmp.lt.s32.totalorder %s24, 0
        %s241 = scalar_select %p240, %s24, 0
        %s242 = sadd.s32 %s241, %s239
        %s243 = smul.addr %s242, 4
        %s244 = scalar_lea.vmem %s0, %s243
        %v245 = vld [vmem:[%s244] sm:$0xf]
        %v246 = vld [vmem:[%s1] sm:$0xff]
        %v247 = vld [vmem:[%s1 + $0x8] sm:$0xff]
        %v248 = vld [vmem:[%s1 + $0x10] sm:$0xff]
        %v249 = vld [vmem:[%s1 + $0x18] sm:$0xff]
        %v250 = vld [vmem:[%s1 + $0x20] sm:$0xff]
        %v251 = vld [vmem:[%s1 + $0x28] sm:$0xff]
        %v252 = vld [vmem:[%s1 + $0x30] sm:$0xff]
        %v253 = vld [vmem:[%s1 + $0x38] sm:$0xff]
        %v254 = vld [vmem:[%s1 + $0x40] sm:$0xff]
        %v255 = vld [vmem:[%s1 + $0x48] sm:$0xff]
        %v256 = vld [vmem:[%s1 + $0x50] sm:$0xff]
        %v257 = vld [vmem:[%s1 + $0x58] sm:$0xff]
        %v258 = vld [vmem:[%s1 + $0x60] sm:$0xff]
        %v259 = vld [vmem:[%s1 + $0x68] sm:$0xff]
        %v260 = vld [vmem:[%s1 + $0x70] sm:$0xff]
        %v261 = vld [vmem:[%s1 + $0x78] sm:$0xff]
        %v262 = vld [vmem:[%s1 + $0x80] sm:$0xff]
        %v263 = vld [vmem:[%s1 + $0x88] sm:$0xff]
        %v264 = vld [vmem:[%s1 + $0x90] sm:$0xff]
        %v265 = vld [vmem:[%s1 + $0x98] sm:$0xff]
        %v266 = vld [vmem:[%s1 + $0xa0] sm:$0xff]
        %v267 = vld [vmem:[%s1 + $0xa8] sm:$0xff]
        %v268 = vld [vmem:[%s1 + $0xb0] sm:$0xff]
        %v269 = vld [vmem:[%s1 + $0xb8] sm:$0xff]
        %v270 = vld [vmem:[%s1 + $0xc0] sm:$0xff]
        %v271 = vld [vmem:[%s1 + $0xc8] sm:$0xff]
        %v272 = vld [vmem:[%s1 + $0xd0] sm:$0xff]
        %v273 = vld [vmem:[%s1 + $0xd8] sm:$0xff]
        %v274 = vld [vmem:[%s1 + $0xe0] sm:$0xff]
        %v275 = vld [vmem:[%s1 + $0xe8] sm:$0xff]
        %v276 = vld [vmem:[%s1 + $0xf0] sm:$0xff]
        %v277 = vld [vmem:[%s1 + $0xf8] sm:$0xff]
        %v278 = vld [vmem:[%s1 + $0x100] sm:$0xff]
        %v279 = vld [vmem:[%s1 + $0x108] sm:$0xff]
        %v280 = vld [vmem:[%s1 + $0x110] sm:$0xff]
        %v281 = vld [vmem:[%s1 + $0x118] sm:$0xff]
        %v282 = vld [vmem:[%s1 + $0x120] sm:$0xff]
        %v283 = vld [vmem:[%s1 + $0x128] sm:$0xff]
        %v284 = vld [vmem:[%s1 + $0x130] sm:$0xff]
        %v285 = vld [vmem:[%s1 + $0x138] sm:$0xff]
        %v286 = vld [vmem:[%s1 + $0x140] sm:$0xff]
        %v287 = vld [vmem:[%s1 + $0x148] sm:$0xff]
        %v288 = vld [vmem:[%s1 + $0x150] sm:$0xff]
        %v289 = vld [vmem:[%s1 + $0x158] sm:$0xff]
        %v290 = vld [vmem:[%s1 + $0x160] sm:$0xff]
        %v291 = vld [vmem:[%s1 + $0x168] sm:$0xff]
        %v292 = vld [vmem:[%s1 + $0x170] sm:$0xff]
        %v293 = vld [vmem:[%s1 + $0x178] sm:$0xff]
        %v294 = vld [vmem:[%s2] sm:$0xff]
        %v295 = vld [vmem:[%s2 + $0x8] sm:$0xff]
        %v296 = vld [vmem:[%s2 + $0x10] sm:$0xff]
        %v297 = vld [vmem:[%s2 + $0x18] sm:$0xff]
        %v298 = vld [vmem:[%s2 + $0x20] sm:$0xff]
        %v299 = vld [vmem:[%s2 + $0x28] sm:$0xff]
        %v300 = vld [vmem:[%s2 + $0x30] sm:$0xff]
        %v301 = vld [vmem:[%s2 + $0x38] sm:$0xff]
        %v302 = vld [vmem:[%s2 + $0x40] sm:$0xff]
        %v303 = vld [vmem:[%s2 + $0x48] sm:$0xff]
        %v304 = vld [vmem:[%s2 + $0x50] sm:$0xff]
        %v305 = vld [vmem:[%s2 + $0x58] sm:$0xff]
        %v306 = vld [vmem:[%s2 + $0x60] sm:$0xff]
        %v307 = vld [vmem:[%s2 + $0x68] sm:$0xff]
        %v308 = vld [vmem:[%s2 + $0x70] sm:$0xff]
        %v309 = vld [vmem:[%s2 + $0x78] sm:$0xff]
        %v310 = vld [vmem:[%s2 + $0x80] sm:$0xff]
        %v311 = vld [vmem:[%s2 + $0x88] sm:$0xff]
        %v312 = vld [vmem:[%s2 + $0x90] sm:$0xff]
        %v313 = vld [vmem:[%s2 + $0x98] sm:$0xff]
        %v314 = vld [vmem:[%s2 + $0xa0] sm:$0xff]
        %v315 = vld [vmem:[%s2 + $0xa8] sm:$0xff]
        %v316 = vld [vmem:[%s2 + $0xb0] sm:$0xff]
        %v317 = vld [vmem:[%s2 + $0xb8] sm:$0xff]
        %v318 = vld [vmem:[%s2 + $0xc0] sm:$0xff]
        %v319 = vld [vmem:[%s2 + $0xc8] sm:$0xff]
        %v320 = vld [vmem:[%s2 + $0xd0] sm:$0xff]
        %v321 = vld [vmem:[%s2 + $0xd8] sm:$0xff]
        %v322 = vld [vmem:[%s2 + $0xe0] sm:$0xff]
        %v323 = vld [vmem:[%s2 + $0xe8] sm:$0xff]
        %v324 = vld [vmem:[%s2 + $0xf0] sm:$0xff]
        %v325 = vld [vmem:[%s2 + $0xf8] sm:$0xff]
        %v326 = vld [vmem:[%s2 + $0x100] sm:$0xff]
        %v327 = vld [vmem:[%s2 + $0x108] sm:$0xff]
        %v328 = vld [vmem:[%s2 + $0x110] sm:$0xff]
        %v329 = vld [vmem:[%s2 + $0x118] sm:$0xff]
        %v330 = vld [vmem:[%s2 + $0x120] sm:$0xff]
        %v331 = vld [vmem:[%s2 + $0x128] sm:$0xff]
        %v332 = vld [vmem:[%s2 + $0x130] sm:$0xff]
        %v333 = vld [vmem:[%s2 + $0x138] sm:$0xff]
        %v334 = vld [vmem:[%s2 + $0x140] sm:$0xff]
        %v335 = vld [vmem:[%s2 + $0x148] sm:$0xff]
        %v336 = vld [vmem:[%s2 + $0x150] sm:$0xff]
        %v337 = vld [vmem:[%s2 + $0x158] sm:$0xff]
        %v338 = vld [vmem:[%s2 + $0x160] sm:$0xff]
        %v339 = vld [vmem:[%s2 + $0x168] sm:$0xff]
        %v340 = vld [vmem:[%s2 + $0x170] sm:$0xff]
        %v341 = vld [vmem:[%s2 + $0x178] sm:$0xff]
        %343 = vset.pattern.permute.xlu0 0
        %344 = vperm.xlu0 %343, %v294
        %v345 = vpop.permute.xlu0 %344
        %348 = vset.pattern.permute.xlu0 0
        %349 = vperm.xlu0 %348, %v295
        %v350 = vpop.permute.xlu0 %349
        %353 = vset.pattern.permute.xlu0 0
        %354 = vperm.xlu0 %353, %v296
        %v355 = vpop.permute.xlu0 %354
        %358 = vset.pattern.permute.xlu0 0
        %359 = vperm.xlu0 %358, %v297
        %v360 = vpop.permute.xlu0 %359
        %363 = vset.pattern.permute.xlu0 0
        %364 = vperm.xlu0 %363, %v298
        %v365 = vpop.permute.xlu0 %364
        %368 = vset.pattern.permute.xlu0 0
        %369 = vperm.xlu0 %368, %v299
        %v370 = vpop.permute.xlu0 %369
        %373 = vset.pattern.permute.xlu0 0
        %374 = vperm.xlu0 %373, %v300
        %v375 = vpop.permute.xlu0 %374
        %378 = vset.pattern.permute.xlu0 0
        %379 = vperm.xlu0 %378, %v301
        %v380 = vpop.permute.xlu0 %379
        %383 = vset.pattern.permute.xlu0 0
        %384 = vperm.xlu0 %383, %v302
        %v385 = vpop.permute.xlu0 %384
        %388 = vset.pattern.permute.xlu0 0
        %389 = vperm.xlu0 %388, %v303
        %v390 = vpop.permute.xlu0 %389
        %393 = vset.pattern.permute.xlu0 0
        %394 = vperm.xlu0 %393, %v304
        %v395 = vpop.permute.xlu0 %394
        %398 = vset.pattern.permute.xlu0 0
        %399 = vperm.xlu0 %398, %v305
        %v400 = vpop.permute.xlu0 %399
        %403 = vset.pattern.permute.xlu0 0
        %404 = vperm.xlu0 %403, %v306
        %v405 = vpop.permute.xlu0 %404
        %408 = vset.pattern.permute.xlu0 0
        %409 = vperm.xlu0 %408, %v307
        %v410 = vpop.permute.xlu0 %409
        %413 = vset.pattern.permute.xlu0 0
        %414 = vperm.xlu0 %413, %v308
        %v415 = vpop.permute.xlu0 %414
        %418 = vset.pattern.permute.xlu0 0
        %419 = vperm.xlu0 %418, %v309
        %v420 = vpop.permute.xlu0 %419
        %423 = vset.pattern.permute.xlu0 0
        %424 = vperm.xlu0 %423, %v310
        %v425 = vpop.permute.xlu0 %424
        %428 = vset.pattern.permute.xlu0 0
        %429 = vperm.xlu0 %428, %v311
        %v430 = vpop.permute.xlu0 %429
        %433 = vset.pattern.permute.xlu0 0
        %434 = vperm.xlu0 %433, %v312
        %v435 = vpop.permute.xlu0 %434
        %438 = vset.pattern.permute.xlu0 0
        %439 = vperm.xlu0 %438, %v313
        %v440 = vpop.permute.xlu0 %439
        %443 = vset.pattern.permute.xlu0 0
        %444 = vperm.xlu0 %443, %v314
        %v445 = vpop.permute.xlu0 %444
        %448 = vset.pattern.permute.xlu0 0
        %449 = vperm.xlu0 %448, %v315
        %v450 = vpop.permute.xlu0 %449
        %453 = vset.pattern.permute.xlu0 0
        %454 = vperm.xlu0 %453, %v316
        %v455 = vpop.permute.xlu0 %454
        %458 = vset.pattern.permute.xlu0 0
        %459 = vperm.xlu0 %458, %v317
        %v460 = vpop.permute.xlu0 %459
        %463 = vset.pattern.permute.xlu0 0
        %464 = vperm.xlu0 %463, %v318
        %v465 = vpop.permute.xlu0 %464
        %468 = vset.pattern.permute.xlu0 0
        %469 = vperm.xlu0 %468, %v319
        %v470 = vpop.permute.xlu0 %469
        %473 = vset.pattern.permute.xlu0 0
        %474 = vperm.xlu0 %473, %v320
        %v475 = vpop.permute.xlu0 %474
        %478 = vset.pattern.permute.xlu0 0
        %479 = vperm.xlu0 %478, %v321
        %v480 = vpop.permute.xlu0 %479
        %483 = vset.pattern.permute.xlu0 0
        %484 = vperm.xlu0 %483, %v322
        %v485 = vpop.permute.xlu0 %484
        %488 = vset.pattern.permute.xlu0 0
        %489 = vperm.xlu0 %488, %v323
        %v490 = vpop.permute.xlu0 %489
        %493 = vset.pattern.permute.xlu0 0
        %494 = vperm.xlu0 %493, %v324
        %v495 = vpop.permute.xlu0 %494
        %498 = vset.pattern.permute.xlu0 0
        %499 = vperm.xlu0 %498, %v325
        %v500 = vpop.permute.xlu0 %499
        %503 = vset.pattern.permute.xlu0 0
        %504 = vperm.xlu0 %503, %v326
        %v505 = vpop.permute.xlu0 %504
        %508 = vset.pattern.permute.xlu0 0
        %509 = vperm.xlu0 %508, %v327
        %v510 = vpop.permute.xlu0 %509
        %513 = vset.pattern.permute.xlu0 0
        %514 = vperm.xlu0 %513, %v328
        %v515 = vpop.permute.xlu0 %514
        %518 = vset.pattern.permute.xlu0 0
        %519 = vperm.xlu0 %518, %v329
        %v520 = vpop.permute.xlu0 %519
        %523 = vset.pattern.permute.xlu0 0
        %524 = vperm.xlu0 %523, %v330
        %v525 = vpop.permute.xlu0 %524
        %528 = vset.pattern.permute.xlu0 0
        %529 = vperm.xlu0 %528, %v331
        %v530 = vpop.permute.xlu0 %529
        %533 = vset.pattern.permute.xlu0 0
        %534 = vperm.xlu0 %533, %v332
        %v535 = vpop.permute.xlu0 %534
        %538 = vset.pattern.permute.xlu0 0
        %539 = vperm.xlu0 %538, %v333
        %v540 = vpop.permute.xlu0 %539
        %543 = vset.pattern.permute.xlu0 0
        %544 = vperm.xlu0 %543, %v334
        %v545 = vpop.permute.xlu0 %544
        %548 = vset.pattern.permute.xlu0 0
        %549 = vperm.xlu0 %548, %v335
        %v550 = vpop.permute.xlu0 %549
        %553 = vset.pattern.permute.xlu0 0
        %554 = vperm.xlu0 %553, %v336
        %v555 = vpop.permute.xlu0 %554
        %558 = vset.pattern.permute.xlu0 0
        %559 = vperm.xlu0 %558, %v337
        %v560 = vpop.permute.xlu0 %559
        %563 = vset.pattern.permute.xlu0 0
        %564 = vperm.xlu0 %563, %v338
        %v565 = vpop.permute.xlu0 %564
        %568 = vset.pattern.permute.xlu0 0
        %569 = vperm.xlu0 %568, %v339
        %v570 = vpop.permute.xlu0 %569
        %573 = vset.pattern.permute.xlu0 0
        %574 = vperm.xlu0 %573, %v340
        %v575 = vpop.permute.xlu0 %574
        %578 = vset.pattern.permute.xlu0 0
        %579 = vperm.xlu0 %578, %v341
        %v580 = vpop.permute.xlu0 %579
        %vm582 = vcmask 31744
        %v584 = vsel %vm582, %v246, 0
        %v587 = vsel %vm582, %v247, 0
        %v590 = vsel %vm582, %v248, 0
        %v593 = vsel %vm582, %v249, 0
        %v596 = vsel %vm582, %v250, 0
        %v599 = vsel %vm582, %v251, 0
        %v602 = vsel %vm582, %v252, 0
        %v605 = vsel %vm582, %v253, 0
        %v608 = vsel %vm582, %v254, 0
        %v611 = vsel %vm582, %v255, 0
        %v614 = vsel %vm582, %v256, 0
        %v617 = vsel %vm582, %v257, 0
        %v620 = vsel %vm582, %v258, 0
        %v623 = vsel %vm582, %v259, 0
        %v626 = vsel %vm582, %v260, 0
        %v629 = vsel %vm582, %v261, 0
        %v632 = vsel %vm582, %v262, 0
        %v635 = vsel %vm582, %v263, 0
        %v638 = vsel %vm582, %v264, 0
        %v641 = vsel %vm582, %v265, 0
        %v644 = vsel %vm582, %v266, 0
        %v647 = vsel %vm582, %v267, 0
        %v650 = vsel %vm582, %v268, 0
        %v653 = vsel %vm582, %v269, 0
        %v656 = vsel %vm582, %v270, 0
        %v659 = vsel %vm582, %v271, 0
        %v662 = vsel %vm582, %v272, 0
        %v665 = vsel %vm582, %v273, 0
        %v668 = vsel %vm582, %v274, 0
        %v671 = vsel %vm582, %v275, 0
        %v674 = vsel %vm582, %v276, 0
        %v677 = vsel %vm582, %v277, 0
        %v680 = vsel %vm582, %v278, 0
        %v683 = vsel %vm582, %v279, 0
        %v686 = vsel %vm582, %v280, 0
        %v689 = vsel %vm582, %v281, 0
        %v692 = vsel %vm582, %v282, 0
        %v695 = vsel %vm582, %v283, 0
        %v698 = vsel %vm582, %v284, 0
        %v701 = vsel %vm582, %v285, 0
        %v704 = vsel %vm582, %v286, 0
        %v707 = vsel %vm582, %v287, 0
        %v710 = vsel %vm582, %v288, 0
        %v713 = vsel %vm582, %v289, 0
        %v716 = vsel %vm582, %v290, 0
        %v719 = vsel %vm582, %v291, 0
        %v722 = vsel %vm582, %v292, 0
        %v725 = vsel %vm582, %v293, 0
        %vm727 = vcmask 1043456
        %v729 = vsel %vm727, %v245, 0
        %731 = vmatpush.msra.mxu0 0.0
        %732 = vmatpush.msra.mxu0 0.0
        %733 = vmatpush.msra.mxu0 0.0
        %734 = vmatpush.msra.mxu0 0.0
        %735 = vmatpush.msra.mxu0 0.0
        %736 = vmatpush.msra.mxu0 0.0
        %737 = vmatpush.msra.mxu0 0.0
        %738 = vmatpush.msra.mxu0 0.0
        %739 = vmatpush.msra.mxu0 0.0
        %740 = vmatpush.msra.mxu0 0.0
        %741 = vmatpush.msra.mxu0 0.0
        %742 = vmatpush.msra.mxu0 0.0
        %743 = vmatpush.msra.mxu0 0.0
        %744 = vmatpush.msra.mxu0 0.0
        %745 = vmatpush.msra.mxu0 0.0
        %746 = vmatpush.msra.mxu0 %v729
        %747 = vmatmul.f32.gmra.mxu0 %v584
        %v748 = vpop.f32.mrf.mxu0
        %v749 = vadd.f32 %v345, %v748
        %750 = vmatmul.f32.gmra.mxu0 %v587
        %v751 = vpop.f32.mrf.mxu0
        %v752 = vadd.f32 %v350, %v751
        %753 = vmatmul.f32.gmra.mxu0 %v590
        %v754 = vpop.f32.mrf.mxu0
        %v755 = vadd.f32 %v355, %v754
        %756 = vmatmul.f32.gmra.mxu0 %v593
        %v757 = vpop.f32.mrf.mxu0
        %v758 = vadd.f32 %v360, %v757
        %759 = vmatmul.f32.gmra.mxu0 %v596
        %v760 = vpop.f32.mrf.mxu0
        %v761 = vadd.f32 %v365, %v760
        %762 = vmatmul.f32.gmra.mxu0 %v599
        %v763 = vpop.f32.mrf.mxu0
        %v764 = vadd.f32 %v370, %v763
        %765 = vmatmul.f32.gmra.mxu0 %v602
        %v766 = vpop.f32.mrf.mxu0
        %v767 = vadd.f32 %v375, %v766
        %768 = vmatmul.f32.gmra.mxu0 %v605
        %v769 = vpop.f32.mrf.mxu0
        %v770 = vadd.f32 %v380, %v769
        %771 = vmatmul.f32.gmra.mxu0 %v608
        %v772 = vpop.f32.mrf.mxu0
        %v773 = vadd.f32 %v385, %v772
        %774 = vmatmul.f32.gmra.mxu0 %v611
        %v775 = vpop.f32.mrf.mxu0
        %v776 = vadd.f32 %v390, %v775
        %777 = vmatmul.f32.gmra.mxu0 %v614
        %v778 = vpop.f32.mrf.mxu0
        %v779 = vadd.f32 %v395, %v778
        %780 = vmatmul.f32.gmra.mxu0 %v617
        %v781 = vpop.f32.mrf.mxu0
        %v782 = vadd.f32 %v400, %v781
        %783 = vmatmul.f32.gmra.mxu0 %v620
        %v784 = vpop.f32.mrf.mxu0
        %v785 = vadd.f32 %v405, %v784
        %786 = vmatmul.f32.gmra.mxu0 %v623
        %v787 = vpop.f32.mrf.mxu0
        %v788 = vadd.f32 %v410, %v787
        %789 = vmatmul.f32.gmra.mxu0 %v626
        %v790 = vpop.f32.mrf.mxu0
        %v791 = vadd.f32 %v415, %v790
        %792 = vmatmul.f32.gmra.mxu0 %v629
        %v793 = vpop.f32.mrf.mxu0
        %v794 = vadd.f32 %v420, %v793
        %795 = vmatmul.f32.gmra.mxu0 %v632
        %v796 = vpop.f32.mrf.mxu0
        %v797 = vadd.f32 %v425, %v796
        %798 = vmatmul.f32.gmra.mxu0 %v635
        %v799 = vpop.f32.mrf.mxu0
        %v800 = vadd.f32 %v430, %v799
        %801 = vmatmul.f32.gmra.mxu0 %v638
        %v802 = vpop.f32.mrf.mxu0
        %v803 = vadd.f32 %v435, %v802
        %804 = vmatmul.f32.gmra.mxu0 %v641
        %v805 = vpop.f32.mrf.mxu0
        %v806 = vadd.f32 %v440, %v805
        %807 = vmatmul.f32.gmra.mxu0 %v644
        %v808 = vpop.f32.mrf.mxu0
        %v809 = vadd.f32 %v445, %v808
        %810 = vmatmul.f32.gmra.mxu0 %v647
        %v811 = vpop.f32.mrf.mxu0
        %v812 = vadd.f32 %v450, %v811
        %813 = vmatmul.f32.gmra.mxu0 %v650
        %v814 = vpop.f32.mrf.mxu0
        %v815 = vadd.f32 %v455, %v814
        %816 = vmatmul.f32.gmra.mxu0 %v653
        %v817 = vpop.f32.mrf.mxu0
        %v818 = vadd.f32 %v460, %v817
        %819 = vmatmul.f32.gmra.mxu0 %v656
        %v820 = vpop.f32.mrf.mxu0
        %v821 = vadd.f32 %v465, %v820
        %822 = vmatmul.f32.gmra.mxu0 %v659
        %v823 = vpop.f32.mrf.mxu0
        %v824 = vadd.f32 %v470, %v823
        %825 = vmatmul.f32.gmra.mxu0 %v662
        %v826 = vpop.f32.mrf.mxu0
        %v827 = vadd.f32 %v475, %v826
        %828 = vmatmul.f32.gmra.mxu0 %v665
        %v829 = vpop.f32.mrf.mxu0
        %v830 = vadd.f32 %v480, %v829
        %831 = vmatmul.f32.gmra.mxu0 %v668
        %v832 = vpop.f32.mrf.mxu0
        %v833 = vadd.f32 %v485, %v832
        %834 = vmatmul.f32.gmra.mxu0 %v671
        %v835 = vpop.f32.mrf.mxu0
        %v836 = vadd.f32 %v490, %v835
        %837 = vmatmul.f32.gmra.mxu0 %v674
        %v838 = vpop.f32.mrf.mxu0
        %v839 = vadd.f32 %v495, %v838
        %840 = vmatmul.f32.gmra.mxu0 %v677
        %v841 = vpop.f32.mrf.mxu0
        %v842 = vadd.f32 %v500, %v841
        %843 = vmatmul.f32.gmra.mxu0 %v680
        %v844 = vpop.f32.mrf.mxu0
        %v845 = vadd.f32 %v505, %v844
        %846 = vmatmul.f32.gmra.mxu0 %v683
        %v847 = vpop.f32.mrf.mxu0
        %v848 = vadd.f32 %v510, %v847
        %849 = vmatmul.f32.gmra.mxu0 %v686
        %v850 = vpop.f32.mrf.mxu0
        %v851 = vadd.f32 %v515, %v850
        %852 = vmatmul.f32.gmra.mxu0 %v689
        %v853 = vpop.f32.mrf.mxu0
        %v854 = vadd.f32 %v520, %v853
        %855 = vmatmul.f32.gmra.mxu0 %v692
        %v856 = vpop.f32.mrf.mxu0
        %v857 = vadd.f32 %v525, %v856
        %858 = vmatmul.f32.gmra.mxu0 %v695
        %v859 = vpop.f32.mrf.mxu0
        %v860 = vadd.f32 %v530, %v859
        %861 = vmatmul.f32.gmra.mxu0 %v698
        %v862 = vpop.f32.mrf.mxu0
        %v863 = vadd.f32 %v535, %v862
        %864 = vmatmul.f32.gmra.mxu0 %v701
        %v865 = vpop.f32.mrf.mxu0
        %v866 = vadd.f32 %v540, %v865
        %867 = vmatmul.f32.gmra.mxu0 %v704
        %v868 = vpop.f32.mrf.mxu0
        %v869 = vadd.f32 %v545, %v868
        %870 = vmatmul.f32.gmra.mxu0 %v707
        %v871 = vpop.f32.mrf.mxu0
        %v872 = vadd.f32 %v550, %v871
        %873 = vmatmul.f32.gmra.mxu0 %v710
        %v874 = vpop.f32.mrf.mxu0
        %v875 = vadd.f32 %v555, %v874
        %876 = vmatmul.f32.gmra.mxu0 %v713
        %v877 = vpop.f32.mrf.mxu0
        %v878 = vadd.f32 %v560, %v877
        %879 = vmatmul.f32.gmra.mxu0 %v716
        %v880 = vpop.f32.mrf.mxu0
        %v881 = vadd.f32 %v565, %v880
        %882 = vmatmul.f32.gmra.mxu0 %v719
        %v883 = vpop.f32.mrf.mxu0
        %v884 = vadd.f32 %v570, %v883
        %885 = vmatmul.f32.gmra.mxu0 %v722
        %v886 = vpop.f32.mrf.mxu0
        %v887 = vadd.f32 %v575, %v886
        %888 = vmatmul.f32.gmra.mxu0 %v725
        %v889 = vpop.f32.mrf.mxu0
        %v890 = vadd.f32 %v580, %v889
        %891 = vdwg.mxu0
        %v892 = vmax.f32 %v749, 0.0
        %v893 = vmax.f32 %v752, 0.0
        %v894 = vmax.f32 %v755, 0.0
        %v895 = vmax.f32 %v758, 0.0
        %v896 = vmax.f32 %v761, 0.0
        %v897 = vmax.f32 %v764, 0.0
        %v898 = vmax.f32 %v767, 0.0
        %v899 = vmax.f32 %v770, 0.0
        %v900 = vmax.f32 %v773, 0.0
        %v901 = vmax.f32 %v776, 0.0
        %v902 = vmax.f32 %v779, 0.0
        %v903 = vmax.f32 %v782, 0.0
        %v904 = vmax.f32 %v785, 0.0
        %v905 = vmax.f32 %v788, 0.0
        %v906 = vmax.f32 %v791, 0.0
        %v907 = vmax.f32 %v794, 0.0
        %v908 = vmax.f32 %v797, 0.0
        %v909 = vmax.f32 %v800, 0.0
        %v910 = vmax.f32 %v803, 0.0
        %v911 = vmax.f32 %v806, 0.0
        %v912 = vmax.f32 %v809, 0.0
        %v913 = vmax.f32 %v812, 0.0
        %v914 = vmax.f32 %v815, 0.0
        %v915 = vmax.f32 %v818, 0.0
        %v916 = vmax.f32 %v821, 0.0
        %v917 = vmax.f32 %v824, 0.0
        %v918 = vmax.f32 %v827, 0.0
        %v919 = vmax.f32 %v830, 0.0
        %v920 = vmax.f32 %v833, 0.0
        %v921 = vmax.f32 %v836, 0.0
        %v922 = vmax.f32 %v839, 0.0
        %v923 = vmax.f32 %v842, 0.0
        %v924 = vmax.f32 %v845, 0.0
        %v925 = vmax.f32 %v848, 0.0
        %v926 = vmax.f32 %v851, 0.0
        %v927 = vmax.f32 %v854, 0.0
        %v928 = vmax.f32 %v857, 0.0
        %v929 = vmax.f32 %v860, 0.0
        %v930 = vmax.f32 %v863, 0.0
        %v931 = vmax.f32 %v866, 0.0
        %v932 = vmax.f32 %v869, 0.0
        %v933 = vmax.f32 %v872, 0.0
        %v934 = vmax.f32 %v875, 0.0
        %v935 = vmax.f32 %v878, 0.0
        %v936 = vmax.f32 %v881, 0.0
        %v937 = vmax.f32 %v884, 0.0
        %v938 = vmax.f32 %v887, 0.0
        %v939 = vmax.f32 %v890, 0.0
        %v940 = vld [vmem:[%s3] sm:$0xff]
        %v941 = vld [vmem:[%s3 + $0x8] sm:$0xff]
        %v942 = vld [vmem:[%s3 + $0x10] sm:$0xff]
        %v943 = vld [vmem:[%s3 + $0x18] sm:$0xff]
        %v944 = vld [vmem:[%s3 + $0x20] sm:$0xff]
        %v945 = vld [vmem:[%s3 + $0x28] sm:$0xff]
        %v946 = vld [vmem:[%s4] sm:$0xff]
        %v947 = vld [vmem:[%s4 + $0x8] sm:$0xff]
        %949 = vset.pattern.permute.xlu0 0
        %950 = vperm.xlu0 %949, %v946
        %v951 = vpop.permute.xlu0 %950
        %954 = vset.pattern.permute.xlu0 0
        %955 = vperm.xlu0 %954, %v947
        %v956 = vpop.permute.xlu0 %955
        %958 = vmatpush.msra.mxu0 %v907
        %959 = vmatpush.msra.mxu0 %v906
        %960 = vmatpush.msra.mxu0 %v905
        %961 = vmatpush.msra.mxu0 %v904
        %962 = vmatpush.msra.mxu0 %v903
        %963 = vmatpush.msra.mxu0 %v902
        %964 = vmatpush.msra.mxu0 %v901
        %965 = vmatpush.msra.mxu0 %v900
        %966 = vmatpush.msra.mxu0 %v899
        %967 = vmatpush.msra.mxu0 %v898
        %968 = vmatpush.msra.mxu0 %v897
        %969 = vmatpush.msra.mxu0 %v896
        %970 = vmatpush.msra.mxu0 %v895
        %971 = vmatpush.msra.mxu0 %v894
        %972 = vmatpush.msra.mxu0 %v893
        %973 = vmatpush.msra.mxu0 %v892
        %974 = vmatmul.f32.gmra.mxu0 %v940
        %v975 = vpop.f32.mrf.mxu0
        %v976 = vadd.f32 %v951, %v975
        %977 = vmatmul.f32.gmra.mxu0 %v943
        %v978 = vpop.f32.mrf.mxu0
        %v979 = vadd.f32 %v956, %v978
        %980 = vdwg.mxu0
        %981 = vmatpush.msra.mxu0 %v923
        %982 = vmatpush.msra.mxu0 %v922
        %983 = vmatpush.msra.mxu0 %v921
        %984 = vmatpush.msra.mxu0 %v920
        %985 = vmatpush.msra.mxu0 %v919
        %986 = vmatpush.msra.mxu0 %v918
        %987 = vmatpush.msra.mxu0 %v917
        %988 = vmatpush.msra.mxu0 %v916
        %989 = vmatpush.msra.mxu0 %v915
        %990 = vmatpush.msra.mxu0 %v914
        %991 = vmatpush.msra.mxu0 %v913
        %992 = vmatpush.msra.mxu0 %v912
        %993 = vmatpush.msra.mxu0 %v911
        %994 = vmatpush.msra.mxu0 %v910
        %995 = vmatpush.msra.mxu0 %v909
        %996 = vmatpush.msra.mxu0 %v908
        %997 = vmatmul.f32.gmra.mxu0 %v941
        %v998 = vpop.f32.mrf.mxu0
        %v999 = vadd.f32 %v976, %v998
        %1000 = vmatmul.f32.gmra.mxu0 %v944
        %v1001 = vpop.f32.mrf.mxu0
        %v1002 = vadd.f32 %v979, %v1001
        %1003 = vdwg.mxu0
        %1004 = vmatpush.msra.mxu0 %v939
        %1005 = vmatpush.msra.mxu0 %v938
        %1006 = vmatpush.msra.mxu0 %v937
        %1007 = vmatpush.msra.mxu0 %v936
        %1008 = vmatpush.msra.mxu0 %v935
        %1009 = vmatpush.msra.mxu0 %v934
        %1010 = vmatpush.msra.mxu0 %v933
        %1011 = vmatpush.msra.mxu0 %v932
        %1012 = vmatpush.msra.mxu0 %v931
        %1013 = vmatpush.msra.mxu0 %v930
        %1014 = vmatpush.msra.mxu0 %v929
        %1015 = vmatpush.msra.mxu0 %v928
        %1016 = vmatpush.msra.mxu0 %v927
        %1017 = vmatpush.msra.mxu0 %v926
        %1018 = vmatpush.msra.mxu0 %v925
        %1019 = vmatpush.msra.mxu0 %v924
        %1020 = vmatmul.f32.gmra.mxu0 %v942
        %v1021 = vpop.f32.mrf.mxu0
        %v1022 = vadd.f32 %v999, %v1021
        %1023 = vmatmul.f32.gmra.mxu0 %v945
        %v1024 = vpop.f32.mrf.mxu0
        %v1025 = vadd.f32 %v1002, %v1024
        %1026 = vdwg.mxu0
        %vm1027 = vcmask 130048
        %1028 = vst.msk [vmem:[%s237] sm:$0xff] %vm1027, %v1022
        %1029 = vst.msk [vmem:[%s237 + $0x8] sm:$0xff] %vm1027, %v1025
        %s1030 = sand.u32 %s153, 1
        %s1031 = scalar_lea.sflag [#allocation3], %s1030
        %s1032 = sand.u32 %s153, 1
        %s1033 = smul.addr %s1032, 16
        %s1034 = scalar_lea.vmem [#allocation2], %s1033
        // Predicated region
        $region41: #{tpu_custom_call.1} parent=39 // pred_check
          %p1035 = pneg %p163
        $region42: #{tpu_custom_call.1} parent=39 // pred_check_branch
          %1037 = sbr.rel (%p1035) target = $region44
        $region43: #{tpu_custom_call.1} parent=39 // pred_region
          %1039 = vsyncadd %s1031, 0
          %s1040 = smul.addr %s23, 2
          %s1041 = sadd.s32 %s24, %s1040
          %s1042 = smul.addr %s1041, 8
          %s1043 = scalar_lea.hbm %s5, %s1042
          %s1044 = sshll.u32 %s1034, 4
          %s1045 = int_to_ptr.vmem [resolvable:$true] %s1044
          %s1046 = sshll.u32 %s1043, 4
          %s1047 = int_to_ptr.hbm [resolvable:$true] %s1046
          %1052 = dma.vmem_to_hbm [thread:$0]  %s1045, 256, %s1047, %s1031, 128, 128, 8
        $region44: #{tpu_custom_call.1} parent=39 // pred_fallthru
          _
      $region40: #{tpu_custom_call.1} parent=5 // pred_fallthru
        _
      %p1053 = scmp.le.s32.totalorder 2, %s14
      // Predicated region
      $region45: #{tpu_custom_call.1} parent=5 // pred_check
        %p1054 = pneg %p1053
      $region46: #{tpu_custom_call.1} parent=5 // pred_check_branch
        %1056 = sbr.rel (%p1054) target = $region48
      $region47: #{tpu_custom_call.1} parent=5 // pred_region
        %s1057 = ssub.s32 %s14, 2
        // Predicated region
        $region49: #{tpu_custom_call.1} parent=47 // pred_check
          %p1058 = pneg %p169
        $region50: #{tpu_custom_call.1} parent=47 // pred_check_branch
          %1060 = sbr.rel (%p1058) target = $region52
        $region51: #{tpu_custom_call.1} parent=47 // pred_region
          %s1061 = sand.u32 %s154, 1
          %s1062 = scalar_lea.sflag [#allocation3], %s1061
          %s1063 = sand.u32 %s154, 1
          %s1064 = smul.addr %s1063, 16
          %s1065 = scalar_lea.vmem [#allocation2], %s1064
          %1067 = dma.done %s1062, 256
        $region52: #{tpu_custom_call.1} parent=47 // pred_fallthru
          _
      $region48: #{tpu_custom_call.1} parent=5 // pred_fallthru
        _
    $region6: #{tpu_custom_call.1} parent=1 // loop_footer
      %s18 = sadd.s32 1, %s14
    $region7: #{tpu_custom_call.1} parent=1 // loop_footer_branch
      %13 = sbr.rel target = $region3
    $region8: #{tpu_custom_call.1} parent=1 // loop_exit
      _
    %1068 = vsyncpa [#allocation3], 1
    %s1069 = scalar_lea.sflag [#allocation3], 1
    %1070 = vsyncpa %s1069, 1

</llo_original>
